<compile_context>
chip_gen: v7x
topology: tpu7x:2x2x1
jax: 0.10.0
libtpu: 0.0.40
codegen_flags: <defaults>
</compile_context>

<pallas_src>
import functools

import jax
import jax.numpy as jnp
from jax.experimental import pallas as pl
from jax.experimental.pallas import tpu as pltpu

RAY_HIDDEN_DIM = 30
OUT_DIM = 1
N_TASKS = 2

LANES = 128
HEAD_COLS = 2 * N_TASKS * OUT_DIM     # 4: [t0.w, t0.b, t1.w, t1.b]
OUT_PAD = 8                           # head cols padded to 8 (full last dim of output)
MISC_ROWS = 8                         # small f32 slab rows
WMAT_ROWS = 2 * LANES                 # bf16 matmul slab: [w1 ; w2 @ heads]

# misc slab row layout (8 x 128, f32):
#   rows 0,1 : w0 rows (Linear(2,H) weight, stored (in_dim, H)), lanes [:30]
#   row  2   : b0, lanes [:30]
#   row  3   : b1, lanes [:30]
#   row  4   : fused head bias (b2 @ wh + bh), lanes [:4]
#   rows 5-7 : zero padding


def _hypernet_kernel(ray_ref, wmat_ref, misc_ref, out_ref):
    """One (TB, .) row block of rays through the whole hypernetwork.

    ray_ref : (TB, 2)    f32 preference rays
    wmat_ref: (256, 128) bf16 packed [w1 ; w2 @ heads] (VMEM-resident across grid)
    misc_ref: (8, 128)   f32 packed w0 rows + biases   (VMEM-resident across grid)
    out_ref : (TB, 8)    f32, fused head outputs in cols [:4]
    """
    x = ray_ref[...]                          # (TB, 2)
    w0r0 = misc_ref[0:1, :]                   # (1, 128)
    w0r1 = misc_ref[1:2, :]
    b0 = misc_ref[2:3, :]
    b1 = misc_ref[3:4, :]
    bh = misc_ref[4:5, :]                     # (1, 128), lanes [4:] are zero

    # Layer 0 (Linear(2,H) + ReLU) on the VPU: K=2, so two broadcast-FMAs
    # beat an MXU pass (a tiny-K matmul costs the same as K=128 on the MXU).
    h = jnp.maximum(x[:, 0:1] * w0r0 + x[:, 1:2] * w0r1 + b0, 0.0)   # (TB,128) f32

    # Remaining layers fused: bf16 MXU inputs, f32 accumulation, f32 bias/ReLU.
    w1 = wmat_ref[0:LANES, :]                 # (128, 128) bf16
    wh = wmat_ref[LANES:2 * LANES, :]         # (128, 128) bf16, fused (w2 @ heads)
    h1 = jnp.dot(h.astype(jnp.bfloat16), w1, preferred_element_type=jnp.float32)
    h1 = jnp.maximum(h1 + b1, 0.0)
    out = jnp.dot(h1.astype(jnp.bfloat16), wh, preferred_element_type=jnp.float32)
    out = out + bh
    # Narrow (8-lane) store: 16x less HBM writeback than a 128-lane f32 output.
    out_ref[...] = out[:, 0:OUT_PAD]


@functools.partial(jax.jit, static_argnames=("block_rows", "core_parallel"))
def _pallas_forward(rays, wmat, misc, *, block_rows, core_parallel):
    bp = rays.shape[0]
    grid = (bp // block_rows,)
    # CORE_PARALLEL shards row blocks across v7x's 2 TensorCores; fallback path
    # uses the portable "parallel" semantic (identical codegen on 1-TC chips).
    sem = pltpu.CORE_PARALLEL if core_parallel else "parallel"
    flops = bp * 2 * (2 * LANES + LANES * LANES + LANES * LANES)
    bytes_accessed = rays.size * 4 + wmat.size * 2 + misc.size * 4 + bp * OUT_PAD * 4
    return pl.pallas_call(
        _hypernet_kernel,
        out_shape=jax.ShapeDtypeStruct((bp, OUT_PAD), jnp.float32),
        grid=grid,
        in_specs=[
            pl.BlockSpec((block_rows, 2), lambda i: (i, 0)),
            # Constant index_map -> weight slabs stay VMEM-resident across the grid.
            pl.BlockSpec((WMAT_ROWS, LANES), lambda i: (0, 0)),
            pl.BlockSpec((MISC_ROWS, LANES), lambda i: (0, 0)),
        ],
        out_specs=pl.BlockSpec((block_rows, OUT_PAD), lambda i: (i, 0)),
        compiler_params=pltpu.CompilerParams(dimension_semantics=(sem,)),
        cost_estimate=pl.CostEstimate(
            flops=flops, transcendentals=0, bytes_accessed=bytes_accessed),
    )(rays, wmat, misc)


_CORE_PARALLEL_BROKEN = False   # flips to True if this runtime rejects CORE_PARALLEL


def _run_forward(rays_padded, wmat, misc, block_rows):
    """Try explicit cross-TensorCore sharding first; fall back to 'parallel'."""
    global _CORE_PARALLEL_BROKEN
    if not _CORE_PARALLEL_BROKEN:
        try:
            out = _pallas_forward(rays_padded, wmat, misc,
                                  block_rows=block_rows, core_parallel=True)
            return jax.block_until_ready(out)
        except Exception:
            _CORE_PARALLEL_BROKEN = True
    return _pallas_forward(rays_padded, wmat, misc,
                           block_rows=block_rows, core_parallel=False)


def _round_up(n, m):
    return ((n + m - 1) // m) * m


def toy_hypernetwork_forward(ray, packed):
    """ray: (2,) or (B, 2) float32 preference ray(s); packed: (wmat_bf16, misc_f32).

    Returns a dict matching the PyTorch module's out_dict:
      single ray : 'task{j}.weights' -> (OUT_DIM,), 'task{j}.bias' -> (OUT_DIM,)
      batched    : 'task{j}.weights' -> (B, OUT_DIM), 'task{j}.bias' -> (B*OUT_DIM,)
    """
    wmat, misc = packed
    ray = jnp.asarray(ray, jnp.float32)
    single = ray.ndim == 1
    ray2d = ray.reshape(1, 2) if single else ray
    b = ray2d.shape[0]

    # Fixed row buckets: 128 rows for any small batch (one compile for all of
    # them); 512-row blocks (multiple of 256 -> fills the v6e/v7x MXU M dim,
    # amortizes the ~0.35us/step pipeline overhead) for larger batches.
    block_rows = 128 if b <= 128 else 512
    bp = _round_up(b, block_rows)
    rays_padded = jnp.pad(ray2d, ((0, bp - b), (0, 0)))

    out = _run_forward(rays_padded, wmat, misc, block_rows)[:b, :HEAD_COLS]

    out_dict = {}
    for j in range(N_TASKS):
        base = 2 * j * OUT_DIM
        w = out[:, base:base + OUT_DIM]
        bia = out[:, base + OUT_DIM:base + 2 * OUT_DIM]
        if single:
            out_dict[f"task{j}.weights"] = w[0]               # (OUT_DIM,)
            out_dict[f"task{j}.bias"] = bia[0].flatten()      # (OUT_DIM,)
        else:
            out_dict[f"task{j}.weights"] = w                  # (B, OUT_DIM)
            out_dict[f"task{j}.bias"] = bia.flatten()         # (B*OUT_DIM,)
    return out_dict


def init_params(key, ray_hidden_dim=RAY_HIDDEN_DIM, out_dim=OUT_DIM, n_tasks=N_TASKS):
    """Raw (unfused) params. Weights stored (in_dim, out_dim); biases (1, out_dim)."""
    keys = jax.random.split(key, 16)

    def lin(kw, kb, fan_in, fan_out):
        bound = 1.0 / jnp.sqrt(fan_in)
        w = jax.random.uniform(kw, (fan_in, fan_out), jnp.float32, -bound, bound)
        bb = jax.random.uniform(kb, (1, fan_out), jnp.float32, -bound, bound)
        return w, bb

    w0, b0 = lin(keys[0], keys[1], 2, ray_hidden_dim)
    w1, b1 = lin(keys[2], keys[3], ray_hidden_dim, ray_hidden_dim)
    w2, b2 = lin(keys[4], keys[5], ray_hidden_dim, ray_hidden_dim)

    head_ws, head_bs = [], []
    k = 6
    for _ in range(n_tasks):
        for _ in range(2):  # weights head, bias head
            hw, hb = lin(keys[k], keys[k + 1], ray_hidden_dim, out_dim)
            head_ws.append(hw)
            head_bs.append(hb)
            k += 2
    wh = jnp.concatenate(head_ws, axis=1)   # (H, 2*n_tasks*out_dim)
    bh = jnp.concatenate(head_bs, axis=1)   # (1, 2*n_tasks*out_dim)
    return (w0, b0, w1, b1, w2, b2, wh, bh)


def pack_params(params):
    """Fuse layer-3 with the task heads (exact: no activation between them) and
    pack: (256,128) bf16 matmul slab [w1 ; w2@heads] + (8,128) f32 slab."""
    w0, b0, w1, b1, w2, b2, wh, bh = params
    h = RAY_HIDDEN_DIM
    wh_f = w2 @ wh                 # (H, HEAD_COLS), fused in f32 before bf16 cast
    bh_f = b2 @ wh + bh            # (1, HEAD_COLS)

    wmat = jnp.zeros((WMAT_ROWS, LANES), jnp.float32)
    wmat = wmat.at[0:h, 0:h].set(w1)
    wmat = wmat.at[LANES:LANES + h, 0:HEAD_COLS].set(wh_f)
    wmat = wmat.astype(jnp.bfloat16)

    misc = jnp.zeros((MISC_ROWS, LANES), jnp.float32)
    misc = misc.at[0:2, 0:h].set(w0)
    misc = misc.at[2, 0:h].set(b0[0])
    misc = misc.at[3, 0:h].set(b1[0])
    misc = misc.at[4, 0:HEAD_COLS].set(bh_f[0])
    return wmat, misc


def _reference_forward(ray, params):
    """Pure-JAX f32 reference using the UNFUSED params (mirrors the PyTorch module)."""
    w0, b0, w1, b1, w2, b2, wh, bh = params
    single = ray.ndim == 1
    x = ray.reshape(1, 2) if single else ray
    h = jnp.maximum(x @ w0 + b0, 0.0)
    h = jnp.maximum(h @ w1 + b1, 0.0)
    f = h @ w2 + b2
    out = f @ wh + bh
    ref = {}
    for j in range(N_TASKS):
        base = 2 * j * OUT_DIM
        w = out[:, base:base + OUT_DIM]
        bia = out[:, base + OUT_DIM:base + 2 * OUT_DIM]
        if single:
            ref[f"task{j}.weights"] = w[0]
            ref[f"task{j}.bias"] = bia[0].flatten()
        else:
            ref[f"task{j}.weights"] = w
            ref[f"task{j}.bias"] = bia.flatten()
    return ref


def _check(got, want, tag):
    # bf16 matmul inputs (f32 accumulation) -> relaxed tolerance vs f32 reference.
    for name in want:
        assert got[name].shape == want[name].shape, (tag, name)
        assert jnp.allclose(got[name], want[name], atol=2e-2, rtol=2e-2), (tag, name)


if __name__ == "__main__":
    key = jax.random.PRNGKey(0)
    k_ray, k_param, k_batch, k_big = jax.random.split(key, 4)

    params = init_params(k_param)
    packed = pack_params(params)

    # Single preference ray on the simplex (module's native semantics).
    ray = jax.random.uniform(k_ray, (2,), jnp.float32)
    ray = ray / jnp.sum(ray)
    out_single = toy_hypernetwork_forward(ray, packed)
    out_single = jax.tree_util.tree_map(jax.block_until_ready, out_single)
    _check(out_single, _reference_forward(ray, params), "single")

    # Small batch (128-row bucket, grid of 1).
    rays = jax.random.uniform(k_batch, (64, 2), jnp.float32)
    rays = rays / jnp.sum(rays, axis=1, keepdims=True)
    out_batch = toy_hypernetwork_forward(rays, packed)
    out_batch = jax.tree_util.tree_map(jax.block_until_ready, out_batch)
    _check(out_batch, _reference_forward(rays, params), "batch64")

    # Larger batch exercising 512-row blocks and a >1 grid (row-block parallel axis).
    rays_big = jax.random.uniform(k_big, (600, 2), jnp.float32)
    rays_big = rays_big / jnp.sum(rays_big, axis=1, keepdims=True)
    out_big = toy_hypernetwork_forward(rays_big, packed)
    out_big = jax.tree_util.tree_map(jax.block_until_ready, out_big)
    _check(out_big, _reference_forward(rays_big, params), "batch600")

    print("KERNEL_OK")
</pallas_src>

<mosaic_0001>
module attributes {stable_mosaic.version = 11 : i64} {
  func.func @_hypernet_kernel(%arg0: i32, %arg1: memref<128x2xf32, #tpu.memory_space<vmem>>, %arg2: memref<256x128xbf16, #tpu.memory_space<vmem>>, %arg3: memref<8x128xf32, #tpu.memory_space<vmem>>, %arg4: memref<128x8xf32, #tpu.memory_space<vmem>>) attributes {dimension_semantics = [#tpu.dimension_semantics<core_parallel>], iteration_bounds = array<i64: 1>, scalar_prefetch = 0 : i64, scratch_operands = 0 : i64, tpu.core_type = #tpu.core_type<tc>, window_params = [{transform_indices = @transform_0, window_bounds = array<i64: 128, 2>}, {pipeline_mode = #tpu.pipeline_mode<synchronous>, transform_indices = @transform_1, window_bounds = array<i64: 256, 128>}, {pipeline_mode = #tpu.pipeline_mode<synchronous>, transform_indices = @transform_2, window_bounds = array<i64: 8, 128>}, {transform_indices = @transform_3, window_bounds = array<i64: 128, 8>}]} {
    %c0 = arith.constant 0 : index
    %c0_0 = arith.constant 0 : index
    %0 = vector.load %arg1[%c0, %c0_0] : memref<128x2xf32, #tpu.memory_space<vmem>>, vector<128x2xf32>
    %c0_1 = arith.constant 0 : index
    %c0_2 = arith.constant 0 : index
    %1 = vector.load %arg3[%c0_1, %c0_2] : memref<8x128xf32, #tpu.memory_space<vmem>>, vector<1x128xf32>
    %c1 = arith.constant 1 : index
    %c0_3 = arith.constant 0 : index
    %2 = vector.load %arg3[%c1, %c0_3] : memref<8x128xf32, #tpu.memory_space<vmem>>, vector<1x128xf32>
    %c2 = arith.constant 2 : index
    %c0_4 = arith.constant 0 : index
    %3 = vector.load %arg3[%c2, %c0_4] : memref<8x128xf32, #tpu.memory_space<vmem>>, vector<1x128xf32>
    %c3 = arith.constant 3 : index
    %c0_5 = arith.constant 0 : index
    %4 = vector.load %arg3[%c3, %c0_5] : memref<8x128xf32, #tpu.memory_space<vmem>>, vector<1x128xf32>
    %c4 = arith.constant 4 : index
    %c0_6 = arith.constant 0 : index
    %5 = vector.load %arg3[%c4, %c0_6] : memref<8x128xf32, #tpu.memory_space<vmem>>, vector<1x128xf32>
    %6 = vector.extract_strided_slice %0 {offsets = [0, 0], sizes = [128, 1], strides = [1, 1]} : vector<128x2xf32> to vector<128x1xf32>
    %7 = vector.broadcast %6 : vector<128x1xf32> to vector<128x128xf32>
    %8 = vector.broadcast %1 : vector<1x128xf32> to vector<128x128xf32>
    %9 = arith.mulf %7, %8 : vector<128x128xf32>
    %10 = vector.extract_strided_slice %0 {offsets = [0, 1], sizes = [128, 1], strides = [1, 1]} : vector<128x2xf32> to vector<128x1xf32>
    %11 = vector.broadcast %10 : vector<128x1xf32> to vector<128x128xf32>
    %12 = vector.broadcast %2 : vector<1x128xf32> to vector<128x128xf32>
    %13 = arith.mulf %11, %12 : vector<128x128xf32>
    %14 = arith.addf %9, %13 : vector<128x128xf32>
    %15 = vector.broadcast %3 : vector<1x128xf32> to vector<128x128xf32>
    %16 = arith.addf %14, %15 : vector<128x128xf32>
    %cst = arith.constant 0.000000e+00 : f32
    %17 = vector.broadcast %cst : f32 to vector<128x128xf32>
    %18 = arith.maximumf %16, %17 : vector<128x128xf32>
    %c0_7 = arith.constant 0 : index
    %c0_8 = arith.constant 0 : index
    %19 = vector.load %arg2[%c0_7, %c0_8] : memref<256x128xbf16, #tpu.memory_space<vmem>>, vector<128x128xbf16>
    %c128 = arith.constant 128 : index
    %c0_9 = arith.constant 0 : index
    %20 = vector.load %arg2[%c128, %c0_9] : memref<256x128xbf16, #tpu.memory_space<vmem>>, vector<128x128xbf16>
    %21 = arith.truncf %18 : vector<128x128xf32> to vector<128x128xbf16>
    %cst_10 = arith.constant dense<0.000000e+00> : vector<128x128xf32>
    %22 = tpu.matmul %21, %19, %cst_10 {dimension_numbers = #tpu.dot_dimension_numbers<[1], [0], [0], [1], [0, 0, 1, 1], [], []>} : vector<128x128xbf16>, vector<128x128xbf16>, vector<128x128xf32> -> vector<128x128xf32>
    %23 = vector.broadcast %4 : vector<1x128xf32> to vector<128x128xf32>
    %24 = arith.addf %22, %23 : vector<128x128xf32>
    %cst_11 = arith.constant 0.000000e+00 : f32
    %25 = vector.broadcast %cst_11 : f32 to vector<128x128xf32>
    %26 = arith.maximumf %24, %25 : vector<128x128xf32>
    %27 = arith.truncf %26 : vector<128x128xf32> to vector<128x128xbf16>
    %cst_12 = arith.constant dense<0.000000e+00> : vector<128x128xf32>
    %28 = tpu.matmul %27, %20, %cst_12 {dimension_numbers = #tpu.dot_dimension_numbers<[1], [0], [0], [1], [0, 0, 1, 1], [], []>} : vector<128x128xbf16>, vector<128x128xbf16>, vector<128x128xf32> -> vector<128x128xf32>
    %29 = vector.broadcast %5 : vector<1x128xf32> to vector<128x128xf32>
    %30 = arith.addf %28, %29 : vector<128x128xf32>
    %31 = vector.extract_strided_slice %30 {offsets = [0, 0], sizes = [128, 8], strides = [1, 1]} : vector<128x128xf32> to vector<128x8xf32>
    %c0_13 = arith.constant 0 : index
    %c0_14 = arith.constant 0 : index
    %32 = vector.load %arg4[%c0_13, %c0_14] : memref<128x8xf32, #tpu.memory_space<vmem>>, vector<128x8xf32>
    tpu.vector_store %arg4[%c0_13, %c0_14], %31 {strides = array<i32>} : memref<128x8xf32, #tpu.memory_space<vmem>>, vector<128x8xf32>,
    return
  }
  func.func @transform_0(%arg0: i32) -> (i32, i32) {
    %c0_i32 = arith.constant 0 : i32
    %c0_i32_0 = arith.constant 0 : i32
    return %arg0, %c0_i32 : i32, i32
  }
  func.func @transform_1(%arg0: i32) -> (i32, i32) {
    %c0_i32 = arith.constant 0 : i32
    %c0_i32_0 = arith.constant 0 : i32
    %c0_i32_1 = arith.constant 0 : i32
    return %c0_i32, %c0_i32_0 : i32, i32
  }
  func.func @transform_2(%arg0: i32) -> (i32, i32) {
    %c0_i32 = arith.constant 0 : i32
    %c0_i32_0 = arith.constant 0 : i32
    %c0_i32_1 = arith.constant 0 : i32
    return %c0_i32, %c0_i32_0 : i32, i32
  }
  func.func @transform_3(%arg0: i32) -> (i32, i32) {
    %c0_i32 = arith.constant 0 : i32
    %c0_i32_0 = arith.constant 0 : i32
    return %arg0, %c0_i32 : i32, i32
  }
}

module attributes {stable_mosaic.version = 11 : i64} {
  func.func @_hypernet_kernel(%arg0: i32, %arg1: memref<128x2xf32, #tpu.memory_space<vmem>>, %arg2: memref<256x128xbf16, #tpu.memory_space<vmem>>, %arg3: memref<8x128xf32, #tpu.memory_space<vmem>>, %arg4: memref<128x8xf32, #tpu.memory_space<vmem>>) attributes {dimension_semantics = [#tpu.dimension_semantics<parallel>], iteration_bounds = array<i64: 1>, scalar_prefetch = 0 : i64, scratch_operands = 0 : i64, tpu.core_type = #tpu.core_type<tc>, window_params = [{transform_indices = @transform_0, window_bounds = array<i64: 128, 2>}, {pipeline_mode = #tpu.pipeline_mode<synchronous>, transform_indices = @transform_1, window_bounds = array<i64: 256, 128>}, {pipeline_mode = #tpu.pipeline_mode<synchronous>, transform_indices = @transform_2, window_bounds = array<i64: 8, 128>}, {transform_indices = @transform_3, window_bounds = array<i64: 128, 8>}]} {
    %c0 = arith.constant 0 : index
    %c0_0 = arith.constant 0 : index
    %0 = vector.load %arg1[%c0, %c0_0] : memref<128x2xf32, #tpu.memory_space<vmem>>, vector<128x2xf32>
    %c0_1 = arith.constant 0 : index
    %c0_2 = arith.constant 0 : index
    %1 = vector.load %arg3[%c0_1, %c0_2] : memref<8x128xf32, #tpu.memory_space<vmem>>, vector<1x128xf32>
    %c1 = arith.constant 1 : index
    %c0_3 = arith.constant 0 : index
    %2 = vector.load %arg3[%c1, %c0_3] : memref<8x128xf32, #tpu.memory_space<vmem>>, vector<1x128xf32>
    %c2 = arith.constant 2 : index
    %c0_4 = arith.constant 0 : index
    %3 = vector.load %arg3[%c2, %c0_4] : memref<8x128xf32, #tpu.memory_space<vmem>>, vector<1x128xf32>
    %c3 = arith.constant 3 : index
    %c0_5 = arith.constant 0 : index
    %4 = vector.load %arg3[%c3, %c0_5] : memref<8x128xf32, #tpu.memory_space<vmem>>, vector<1x128xf32>
    %c4 = arith.constant 4 : index
    %c0_6 = arith.constant 0 : index
    %5 = vector.load %arg3[%c4, %c0_6] : memref<8x128xf32, #tpu.memory_space<vmem>>, vector<1x128xf32>
    %6 = vector.extract_strided_slice %0 {offsets = [0, 0], sizes = [128, 1], strides = [1, 1]} : vector<128x2xf32> to vector<128x1xf32>
    %7 = vector.broadcast %6 : vector<128x1xf32> to vector<128x128xf32>
    %8 = vector.broadcast %1 : vector<1x128xf32> to vector<128x128xf32>
    %9 = arith.mulf %7, %8 : vector<128x128xf32>
    %10 = vector.extract_strided_slice %0 {offsets = [0, 1], sizes = [128, 1], strides = [1, 1]} : vector<128x2xf32> to vector<128x1xf32>
    %11 = vector.broadcast %10 : vector<128x1xf32> to vector<128x128xf32>
    %12 = vector.broadcast %2 : vector<1x128xf32> to vector<128x128xf32>
    %13 = arith.mulf %11, %12 : vector<128x128xf32>
    %14 = arith.addf %9, %13 : vector<128x128xf32>
    %15 = vector.broadcast %3 : vector<1x128xf32> to vector<128x128xf32>
    %16 = arith.addf %14, %15 : vector<128x128xf32>
    %cst = arith.constant 0.000000e+00 : f32
    %17 = vector.broadcast %cst : f32 to vector<128x128xf32>
    %18 = arith.maximumf %16, %17 : vector<128x128xf32>
    %c0_7 = arith.constant 0 : index
    %c0_8 = arith.constant 0 : index
    %19 = vector.load %arg2[%c0_7, %c0_8] : memref<256x128xbf16, #tpu.memory_space<vmem>>, vector<128x128xbf16>
    %c128 = arith.constant 128 : index
    %c0_9 = arith.constant 0 : index
    %20 = vector.load %arg2[%c128, %c0_9] : memref<256x128xbf16, #tpu.memory_space<vmem>>, vector<128x128xbf16>
    %21 = arith.truncf %18 : vector<128x128xf32> to vector<128x128xbf16>
    %cst_10 = arith.constant dense<0.000000e+00> : vector<128x128xf32>
    %22 = tpu.matmul %21, %19, %cst_10 {dimension_numbers = #tpu.dot_dimension_numbers<[1], [0], [0], [1], [0, 0, 1, 1], [], []>} : vector<128x128xbf16>, vector<128x128xbf16>, vector<128x128xf32> -> vector<128x128xf32>
    %23 = vector.broadcast %4 : vector<1x128xf32> to vector<128x128xf32>
    %24 = arith.addf %22, %23 : vector<128x128xf32>
    %cst_11 = arith.constant 0.000000e+00 : f32
    %25 = vector.broadcast %cst_11 : f32 to vector<128x128xf32>
    %26 = arith.maximumf %24, %25 : vector<128x128xf32>
    %27 = arith.truncf %26 : vector<128x128xf32> to vector<128x128xbf16>
    %cst_12 = arith.constant dense<0.000000e+00> : vector<128x128xf32>
    %28 = tpu.matmul %27, %20, %cst_12 {dimension_numbers = #tpu.dot_dimension_numbers<[1], [0], [0], [1], [0, 0, 1, 1], [], []>} : vector<128x128xbf16>, vector<128x128xbf16>, vector<128x128xf32> -> vector<128x128xf32>
    %29 = vector.broadcast %5 : vector<1x128xf32> to vector<128x128xf32>
    %30 = arith.addf %28, %29 : vector<128x128xf32>
    %31 = vector.extract_strided_slice %30 {offsets = [0, 0], sizes = [128, 8], strides = [1, 1]} : vector<128x128xf32> to vector<128x8xf32>
    %c0_13 = arith.constant 0 : index
    %c0_14 = arith.constant 0 : index
    %32 = vector.load %arg4[%c0_13, %c0_14] : memref<128x8xf32, #tpu.memory_space<vmem>>, vector<128x8xf32>
    tpu.vector_store %arg4[%c0_13, %c0_14], %31 {strides = array<i32>} : memref<128x8xf32, #tpu.memory_space<vmem>>, vector<128x8xf32>,
    return
  }
  func.func @transform_0(%arg0: i32) -> (i32, i32) {
    %c0_i32 = arith.constant 0 : i32
    %c0_i32_0 = arith.constant 0 : i32
    return %arg0, %c0_i32 : i32, i32
  }
  func.func @transform_1(%arg0: i32) -> (i32, i32) {
    %c0_i32 = arith.constant 0 : i32
    %c0_i32_0 = arith.constant 0 : i32
    %c0_i32_1 = arith.constant 0 : i32
    return %c0_i32, %c0_i32_0 : i32, i32
  }
  func.func @transform_2(%arg0: i32) -> (i32, i32) {
    %c0_i32 = arith.constant 0 : i32
    %c0_i32_0 = arith.constant 0 : i32
    %c0_i32_1 = arith.constant 0 : i32
    return %c0_i32, %c0_i32_0 : i32, i32
  }
  func.func @transform_3(%arg0: i32) -> (i32, i32) {
    %c0_i32 = arith.constant 0 : i32
    %c0_i32_0 = arith.constant 0 : i32
    return %arg0, %c0_i32 : i32, i32
  }
}

</mosaic_0001>

<llo_original>
// kernel: _pallas_forward.1
$region0: #{_pallas_forward.1}
  #allocation0 [shape = 'u32[]', space=smem, size = 0x4, offset = 0x4, fixed_abs, tag = 'smem constant byte address 0x4 - core index']
  #allocation1 [shape = 'u32[144,128]{1,0:T(1,128)}', space=vmem, size = 0x12000, scoped, tag = 'internal scratch']
  %s0 = inlined_call_operand.vmem [shape: f32[128,2], index: 0, kind: input, shape index: {}]
  %s1 = inlined_call_operand.vmem [shape: bf16[256,128], index: 1, kind: input, shape index: {}]
  %s2 = inlined_call_operand.vmem [shape: f32[8,128], index: 2, kind: input, shape index: {}]
  %s3 = inlined_call_operand.vmem [shape: f32[128,8], index: 3, kind: output, shape index: {}]
  %s4 = sld [smem:[#allocation0]]
  $region22: #{_pallas_forward.1} parent=0
    _
  %s6 = ssub.s32 1, %s4
  %s7 = scalar_select 0, %s6, %s4
  // Predicated region
  $region2: #{_pallas_forward.1} parent=0 // pred_check
    _
  $region3: #{_pallas_forward.1} parent=0 // pred_check_branch
    %9 = sbr.rel (0) target = $region5
  $region4: #{_pallas_forward.1} parent=0 // pred_region
    %s10 = smul.u32 16, %s7
    %p11 = scmp.lt.s32.totalorder %s10, 15
    %s12 = scalar_select %p11, %s10, 15
    %s13 = smul.addr %s12, 8
    %s14 = scalar_lea.vmem %s0, %s13
    %s15 = smul.u32 16, %s7
  $region5: #{_pallas_forward.1} parent=0 // pred_fallthru
    _
  // Predicated region
  $region6: #{_pallas_forward.1} parent=0 // pred_check
    _
  $region7: #{_pallas_forward.1} parent=0 // pred_check_branch
    %17 = sbr.rel (0) target = $region9
  $region8: #{_pallas_forward.1} parent=0 // pred_region
    _
  $region9: #{_pallas_forward.1} parent=0 // pred_fallthru
    _
  // Predicated region
  $region10: #{_pallas_forward.1} parent=0 // pred_check
    _
  $region11: #{_pallas_forward.1} parent=0 // pred_check_branch
    %19 = sbr.rel (0) target = $region13
  $region12: #{_pallas_forward.1} parent=0 // pred_region
    _
  $region13: #{_pallas_forward.1} parent=0 // pred_fallthru
    _
  %s20 = smul.u32 16, %s7
  %p21 = scmp.lt.s32.totalorder %s20, 15
  %s22 = scalar_select %p21, %s20, 15
  %s23 = smul.addr %s22, 8
  %s24 = scalar_lea.vmem %s0, %s23
  %s25 = smul.u32 16, %s7
  %p26 = scmp.lt.s32.totalorder %s25, 15
  %s27 = scalar_select %p26, %s25, 15
  %s28 = smul.addr %s27, 8
  %s29 = scalar_lea.vmem %s3, %s28
  %s30 = smul.u32 16, %s7
  %p31 = scmp.lt.s32.totalorder %s30, 15
  %s32 = scalar_select %p31, %s30, 15
  %s33 = smul.addr %s32, 8
  %s34 = scalar_lea.vmem %s0, %s33
  %s35 = smul.u32 16, %s7
  %s36 = smul.u32 16, %s7
  %p37 = scmp.lt.s32.totalorder %s36, 15
  %s38 = scalar_select %p37, %s36, 15
  %s39 = smul.addr %s38, 8
  %s40 = scalar_lea.vmem %s3, %s39
  %s41 = smul.u32 16, %s7
  %v43 = vld [vmem:[%s34] sm:$0xff]
  %v44 = vld [vmem:[%s34 + $0x8] sm:$0xff]
  %v45 = vld [vmem:[%s34 + $0x10] sm:$0xff]
  %v46 = vld [vmem:[%s34 + $0x18] sm:$0xff]
  %v47 = vld [vmem:[%s34 + $0x20] sm:$0xff]
  %v48 = vld [vmem:[%s34 + $0x28] sm:$0xff]
  %v49 = vld [vmem:[%s34 + $0x30] sm:$0xff]
  %v50 = vld [vmem:[%s34 + $0x38] sm:$0xff]
  %v51 = vld [vmem:[%s34 + $0x40] sm:$0xff]
  %v52 = vld [vmem:[%s34 + $0x48] sm:$0xff]
  %v53 = vld [vmem:[%s34 + $0x50] sm:$0xff]
  %v54 = vld [vmem:[%s34 + $0x58] sm:$0xff]
  %v55 = vld [vmem:[%s34 + $0x60] sm:$0xff]
  %v56 = vld [vmem:[%s34 + $0x68] sm:$0xff]
  %v57 = vld [vmem:[%s34 + $0x70] sm:$0xff]
  %v58 = vld [vmem:[%s34 + $0x78] sm:$0xff]
  %v59 = vld [vmem:[%s2] sm:$0x1]
  %v60 = vld [vmem:[%s2 + $0x1] sm:$0x1]
  %v61 = vld [vmem:[%s2 + $0x2] sm:$0x1]
  %v62 = vld [vmem:[%s2 + $0x3] sm:$0x1]
  %v63 = vld [vmem:[%s2 + $0x4] sm:$0x1]
  %65 = vset.pattern.permute.xlu0 0
  %66 = vperm.xlu0 %65, %v43
  %v67 = vpop.permute.xlu0 %66
  %70 = vset.pattern.permute.xlu0 0
  %71 = vperm.xlu0 %70, %v44
  %v72 = vpop.permute.xlu0 %71
  %75 = vset.pattern.permute.xlu0 0
  %76 = vperm.xlu0 %75, %v45
  %v77 = vpop.permute.xlu0 %76
  %80 = vset.pattern.permute.xlu0 0
  %81 = vperm.xlu0 %80, %v46
  %v82 = vpop.permute.xlu0 %81
  %85 = vset.pattern.permute.xlu0 0
  %86 = vperm.xlu0 %85, %v47
  %v87 = vpop.permute.xlu0 %86
  %90 = vset.pattern.permute.xlu0 0
  %91 = vperm.xlu0 %90, %v48
  %v92 = vpop.permute.xlu0 %91
  %95 = vset.pattern.permute.xlu0 0
  %96 = vperm.xlu0 %95, %v49
  %v97 = vpop.permute.xlu0 %96
  %100 = vset.pattern.permute.xlu0 0
  %101 = vperm.xlu0 %100, %v50
  %v102 = vpop.permute.xlu0 %101
  %105 = vset.pattern.permute.xlu0 0
  %106 = vperm.xlu0 %105, %v51
  %v107 = vpop.permute.xlu0 %106
  %110 = vset.pattern.permute.xlu0 0
  %111 = vperm.xlu0 %110, %v52
  %v112 = vpop.permute.xlu0 %111
  %115 = vset.pattern.permute.xlu0 0
  %116 = vperm.xlu0 %115, %v53
  %v117 = vpop.permute.xlu0 %116
  %120 = vset.pattern.permute.xlu0 0
  %121 = vperm.xlu0 %120, %v54
  %v122 = vpop.permute.xlu0 %121
  %125 = vset.pattern.permute.xlu0 0
  %126 = vperm.xlu0 %125, %v55
  %v127 = vpop.permute.xlu0 %126
  %130 = vset.pattern.permute.xlu0 0
  %131 = vperm.xlu0 %130, %v56
  %v132 = vpop.permute.xlu0 %131
  %135 = vset.pattern.permute.xlu0 0
  %136 = vperm.xlu0 %135, %v57
  %v137 = vpop.permute.xlu0 %136
  %140 = vset.pattern.permute.xlu0 0
  %141 = vperm.xlu0 %140, %v58
  %v142 = vpop.permute.xlu0 %141
  %v144 = vlaneseq
  %v145 = vshrl.u32 %v144, 7
  %v146 = vsub.s32 0, %v145
  %v147 = vrot.slane %v59, %v146
  %v148 = vmul.f32 %v67, %v147
  %v149 = vmul.f32 %v72, %v147
  %v150 = vmul.f32 %v77, %v147
  %v151 = vmul.f32 %v82, %v147
  %v152 = vmul.f32 %v87, %v147
  %v153 = vmul.f32 %v92, %v147
  %v154 = vmul.f32 %v97, %v147
  %v155 = vmul.f32 %v102, %v147
  %v156 = vmul.f32 %v107, %v147
  %v157 = vmul.f32 %v112, %v147
  %v158 = vmul.f32 %v117, %v147
  %v159 = vmul.f32 %v122, %v147
  %v160 = vmul.f32 %v127, %v147
  %v161 = vmul.f32 %v132, %v147
  %v162 = vmul.f32 %v137, %v147
  %v163 = vmul.f32 %v142, %v147
  %164 = vset.pattern.permute.xlu0 1
  %165 = vperm.xlu0 %164, %v43
  %v166 = vpop.permute.xlu0 %165
  %168 = vset.pattern.permute.xlu0 1
  %169 = vperm.xlu0 %168, %v44
  %v170 = vpop.permute.xlu0 %169
  %172 = vset.pattern.permute.xlu0 1
  %173 = vperm.xlu0 %172, %v45
  %v174 = vpop.permute.xlu0 %173
  %176 = vset.pattern.permute.xlu0 1
  %177 = vperm.xlu0 %176, %v46
  %v178 = vpop.permute.xlu0 %177
  %180 = vset.pattern.permute.xlu0 1
  %181 = vperm.xlu0 %180, %v47
  %v182 = vpop.permute.xlu0 %181
  %184 = vset.pattern.permute.xlu0 1
  %185 = vperm.xlu0 %184, %v48
  %v186 = vpop.permute.xlu0 %185
  %188 = vset.pattern.permute.xlu0 1
  %189 = vperm.xlu0 %188, %v49
  %v190 = vpop.permute.xlu0 %189
  %192 = vset.pattern.permute.xlu0 1
  %193 = vperm.xlu0 %192, %v50
  %v194 = vpop.permute.xlu0 %193
  %196 = vset.pattern.permute.xlu0 1
  %197 = vperm.xlu0 %196, %v51
  %v198 = vpop.permute.xlu0 %197
  %200 = vset.pattern.permute.xlu0 1
  %201 = vperm.xlu0 %200, %v52
  %v202 = vpop.permute.xlu0 %201
  %204 = vset.pattern.permute.xlu0 1
  %205 = vperm.xlu0 %204, %v53
  %v206 = vpop.permute.xlu0 %205
  %208 = vset.pattern.permute.xlu0 1
  %209 = vperm.xlu0 %208, %v54
  %v210 = vpop.permute.xlu0 %209
  %212 = vset.pattern.permute.xlu0 1
  %213 = vperm.xlu0 %212, %v55
  %v214 = vpop.permute.xlu0 %213
  %216 = vset.pattern.permute.xlu0 1
  %217 = vperm.xlu0 %216, %v56
  %v218 = vpop.permute.xlu0 %217
  %220 = vset.pattern.permute.xlu0 1
  %221 = vperm.xlu0 %220, %v57
  %v222 = vpop.permute.xlu0 %221
  %224 = vset.pattern.permute.xlu0 1
  %225 = vperm.xlu0 %224, %v58
  %v226 = vpop.permute.xlu0 %225
  %v228 = vlaneseq
  %v229 = vshrl.u32 %v228, 7
  %v230 = vsub.s32 0, %v229
  %v231 = vrot.slane %v60, %v230
  %v232 = vmul.f32 %v166, %v231
  %v233 = vmul.f32 %v170, %v231
  %v234 = vmul.f32 %v174, %v231
  %v235 = vmul.f32 %v178, %v231
  %v236 = vmul.f32 %v182, %v231
  %v237 = vmul.f32 %v186, %v231
  %v238 = vmul.f32 %v190, %v231
  %v239 = vmul.f32 %v194, %v231
  %v240 = vmul.f32 %v198, %v231
  %v241 = vmul.f32 %v202, %v231
  %v242 = vmul.f32 %v206, %v231
  %v243 = vmul.f32 %v210, %v231
  %v244 = vmul.f32 %v214, %v231
  %v245 = vmul.f32 %v218, %v231
  %v246 = vmul.f32 %v222, %v231
  %v247 = vmul.f32 %v226, %v231
  %v248 = vadd.f32 %v148, %v232
  %v249 = vadd.f32 %v149, %v233
  %v250 = vadd.f32 %v150, %v234
  %v251 = vadd.f32 %v151, %v235
  %v252 = vadd.f32 %v152, %v236
  %v253 = vadd.f32 %v153, %v237
  %v254 = vadd.f32 %v154, %v238
  %v255 = vadd.f32 %v155, %v239
  %v256 = vadd.f32 %v156, %v240
  %v257 = vadd.f32 %v157, %v241
  %v258 = vadd.f32 %v158, %v242
  %v259 = vadd.f32 %v159, %v243
  %v260 = vadd.f32 %v160, %v244
  %v261 = vadd.f32 %v161, %v245
  %v262 = vadd.f32 %v162, %v246
  %v263 = vadd.f32 %v163, %v247
  %v264 = vlaneseq
  %v265 = vshrl.u32 %v264, 7
  %v266 = vsub.s32 0, %v265
  %v267 = vrot.slane %v61, %v266
  %v268 = vadd.f32 %v248, %v267
  %v269 = vadd.f32 %v249, %v267
  %v270 = vadd.f32 %v250, %v267
  %v271 = vadd.f32 %v251, %v267
  %v272 = vadd.f32 %v252, %v267
  %v273 = vadd.f32 %v253, %v267
  %v274 = vadd.f32 %v254, %v267
  %v275 = vadd.f32 %v255, %v267
  %v276 = vadd.f32 %v256, %v267
  %v277 = vadd.f32 %v257, %v267
  %v278 = vadd.f32 %v258, %v267
  %v279 = vadd.f32 %v259, %v267
  %v280 = vadd.f32 %v260, %v267
  %v281 = vadd.f32 %v261, %v267
  %v282 = vadd.f32 %v262, %v267
  %v283 = vadd.f32 %v263, %v267
  %v284 = vmax.f32 %v268, 0.0
  %v285 = vmax.f32 %v269, 0.0
  %v286 = vmax.f32 %v270, 0.0
  %v287 = vmax.f32 %v271, 0.0
  %v288 = vmax.f32 %v272, 0.0
  %v289 = vmax.f32 %v273, 0.0
  %v290 = vmax.f32 %v274, 0.0
  %v291 = vmax.f32 %v275, 0.0
  %v292 = vmax.f32 %v276, 0.0
  %v293 = vmax.f32 %v277, 0.0
  %v294 = vmax.f32 %v278, 0.0
  %v295 = vmax.f32 %v279, 0.0
  %v296 = vmax.f32 %v280, 0.0
  %v297 = vmax.f32 %v281, 0.0
  %v298 = vmax.f32 %v282, 0.0
  %v299 = vmax.f32 %v283, 0.0
  %v300 = vld [vmem:[%s1] sm:$0xf]
  %v301 = vld [vmem:[%s1 + $0x4] sm:$0xf]
  %v302 = vld [vmem:[%s1 + $0x8] sm:$0xf]
  %v303 = vld [vmem:[%s1 + $0xc] sm:$0xf]
  %v304 = vld [vmem:[%s1 + $0x10] sm:$0xf]
  %v305 = vld [vmem:[%s1 + $0x14] sm:$0xf]
  %v306 = vld [vmem:[%s1 + $0x18] sm:$0xf]
  %v307 = vld [vmem:[%s1 + $0x1c] sm:$0xf]
  %v308 = vld [vmem:[%s1 + $0x20] sm:$0xf]
  %v309 = vld [vmem:[%s1 + $0x24] sm:$0xf]
  %v310 = vld [vmem:[%s1 + $0x28] sm:$0xf]
  %v311 = vld [vmem:[%s1 + $0x2c] sm:$0xf]
  %v312 = vld [vmem:[%s1 + $0x30] sm:$0xf]
  %v313 = vld [vmem:[%s1 + $0x34] sm:$0xf]
  %v314 = vld [vmem:[%s1 + $0x38] sm:$0xf]
  %v315 = vld [vmem:[%s1 + $0x3c] sm:$0xf]
  %v316 = vld [vmem:[%s1 + $0x40] sm:$0xf]
  %v317 = vld [vmem:[%s1 + $0x44] sm:$0xf]
  %v318 = vld [vmem:[%s1 + $0x48] sm:$0xf]
  %v319 = vld [vmem:[%s1 + $0x4c] sm:$0xf]
  %v320 = vld [vmem:[%s1 + $0x50] sm:$0xf]
  %v321 = vld [vmem:[%s1 + $0x54] sm:$0xf]
  %v322 = vld [vmem:[%s1 + $0x58] sm:$0xf]
  %v323 = vld [vmem:[%s1 + $0x5c] sm:$0xf]
  %v324 = vld [vmem:[%s1 + $0x60] sm:$0xf]
  %v325 = vld [vmem:[%s1 + $0x64] sm:$0xf]
  %v326 = vld [vmem:[%s1 + $0x68] sm:$0xf]
  %v327 = vld [vmem:[%s1 + $0x6c] sm:$0xf]
  %v328 = vld [vmem:[%s1 + $0x70] sm:$0xf]
  %v329 = vld [vmem:[%s1 + $0x74] sm:$0xf]
  %v330 = vld [vmem:[%s1 + $0x78] sm:$0xf]
  %v331 = vld [vmem:[%s1 + $0x7c] sm:$0xf]
  %v332 = vpack.c.bf16 %v285, %v284
  %v333 = vpack.c.bf16 %v287, %v286
  %v334 = vpack.c.bf16 %v289, %v288
  %v335 = vpack.c.bf16 %v291, %v290
  %v336 = vpack.c.bf16 %v293, %v292
  %v337 = vpack.c.bf16 %v295, %v294
  %v338 = vpack.c.bf16 %v297, %v296
  %v339 = vpack.c.bf16 %v299, %v298
  %v340 = vlaneseq
  %v341 = vshrl.u32 %v340, 7
  %v342 = vsub.s32 0, %v341
  %v343 = vrot.slane %v62, %v342
  %v360 = vunpack.c.l.b16 %v300
  %v361 = vunpack.c.l.b16 %v301
  %v362 = vunpack.c.l.b16 %v302
  %v363 = vunpack.c.l.b16 %v303
  %v364 = vunpack.c.l.b16 %v304
  %v365 = vunpack.c.l.b16 %v305
  %v366 = vunpack.c.l.b16 %v306
  %v367 = vunpack.c.l.b16 %v307
  %v368 = vunpack.c.l.b16 %v308
  %v369 = vunpack.c.l.b16 %v309
  %v370 = vunpack.c.l.b16 %v310
  %v371 = vunpack.c.l.b16 %v311
  %v372 = vunpack.c.l.b16 %v312
  %v373 = vunpack.c.l.b16 %v313
  %v374 = vunpack.c.l.b16 %v314
  %v375 = vunpack.c.l.b16 %v315
  %v376 = vpack.c.b16 %v361, %v360
  %v377 = vpack.c.b16 %v363, %v362
  %v378 = vpack.c.b16 %v365, %v364
  %v379 = vpack.c.b16 %v367, %v366
  %v380 = vpack.c.b16 %v369, %v368
  %v381 = vpack.c.b16 %v371, %v370
  %v382 = vpack.c.b16 %v373, %v372
  %v383 = vpack.c.b16 %v375, %v374
  %392 = vmatprep.subr.bf16.mxu0 0
  %393 = vmatpush1.bf16.msra.mxu0 %v376
  %394 = vmatprep.subr.bf16.mxu0 0
  %395 = vmatpush1.bf16.msra.mxu0 %v377
  %396 = vmatprep.subr.bf16.mxu0 0
  %397 = vmatpush1.bf16.msra.mxu0 %v378
  %398 = vmatprep.subr.bf16.mxu0 0
  %399 = vmatpush1.bf16.msra.mxu0 %v379
  %400 = vmatprep.subr.bf16.mxu0 0
  %401 = vmatpush1.bf16.msra.mxu0 %v380
  %402 = vmatprep.subr.bf16.mxu0 0
  %403 = vmatpush1.bf16.msra.mxu0 %v381
  %404 = vmatprep.subr.bf16.mxu0 0
  %405 = vmatpush1.bf16.msra.mxu0 %v382
  %406 = vmatprep.subr.bf16.mxu0 0
  %407 = vmatpush1.bf16.msra.mxu0 %v383
  %408 = vmatprep.subr.bf16.mxu0 0
  %409 = vmatpush1.bf16.msra.mxu0 0
  %410 = vmatprep.subr.bf16.mxu0 0
  %411 = vmatpush1.bf16.msra.mxu0 0
  %412 = vmatprep.subr.bf16.mxu0 0
  %413 = vmatpush1.bf16.msra.mxu0 0
  %414 = vmatprep.subr.bf16.mxu0 0
  %415 = vmatpush1.bf16.msra.mxu0 0
  %416 = vmatprep.subr.bf16.mxu0 0
  %417 = vmatpush1.bf16.msra.mxu0 0
  %418 = vmatprep.subr.bf16.mxu0 0
  %419 = vmatpush1.bf16.msra.mxu0 0
  %420 = vmatprep.subr.bf16.mxu0 0
  %421 = vmatpush1.bf16.msra.mxu0 0
  %422 = vmatprep.subr.bf16.mxu0 0
  %423 = vmatpush1.bf16.msra.mxu0 0
  %424 = vmatprep.mubr.bf16.mxu0 0
  %425 = vmatmul.mubr.bf16.gmra.mrb[0].mxu0 %v332
  %v426 = vpop.f32.mrb[0].mxu0
  %v427 = vadd.f32 %v343, %v426
  %v428 = vpop.f32.mrb[0].mxu0
  %v429 = vpop.f32.mrb[0].mxu0
  %v430 = vadd.f32 %v343, %v429
  %v431 = vpop.f32.mrb[0].mxu0
  %432 = vmatprep.mubr.bf16.mxu0 0
  %433 = vmatmul.mubr.bf16.gmra.mrb[0].mxu0 %v333
  %v434 = vpop.f32.mrb[0].mxu0
  %v435 = vadd.f32 %v343, %v434
  %v436 = vpop.f32.mrb[0].mxu0
  %v437 = vpop.f32.mrb[0].mxu0
  %v438 = vadd.f32 %v343, %v437
  %v439 = vpop.f32.mrb[0].mxu0
  %440 = vmatprep.mubr.bf16.mxu0 0
  %441 = vmatmul.mubr.bf16.gmra.mrb[0].mxu0 %v334
  %v442 = vpop.f32.mrb[0].mxu0
  %v443 = vadd.f32 %v343, %v442
  %v444 = vpop.f32.mrb[0].mxu0
  %v445 = vpop.f32.mrb[0].mxu0
  %v446 = vadd.f32 %v343, %v445
  %v447 = vpop.f32.mrb[0].mxu0
  %448 = vmatprep.mubr.bf16.mxu0 0
  %449 = vmatmul.mubr.bf16.gmra.mrb[0].mxu0 %v335
  %v450 = vpop.f32.mrb[0].mxu0
  %v451 = vadd.f32 %v343, %v450
  %v452 = vpop.f32.mrb[0].mxu0
  %v453 = vpop.f32.mrb[0].mxu0
  %v454 = vadd.f32 %v343, %v453
  %v455 = vpop.f32.mrb[0].mxu0
  %456 = vmatprep.mubr.bf16.mxu0 0
  %457 = vmatmul.mubr.bf16.gmra.mrb[0].mxu0 %v336
  %v458 = vpop.f32.mrb[0].mxu0
  %v459 = vadd.f32 %v343, %v458
  %v460 = vpop.f32.mrb[0].mxu0
  %v461 = vpop.f32.mrb[0].mxu0
  %v462 = vadd.f32 %v343, %v461
  %v463 = vpop.f32.mrb[0].mxu0
  %464 = vmatprep.mubr.bf16.mxu0 0
  %465 = vmatmul.mubr.bf16.gmra.mrb[0].mxu0 %v337
  %v466 = vpop.f32.mrb[0].mxu0
  %v467 = vadd.f32 %v343, %v466
  %v468 = vpop.f32.mrb[0].mxu0
  %v469 = vpop.f32.mrb[0].mxu0
  %v470 = vadd.f32 %v343, %v469
  %v471 = vpop.f32.mrb[0].mxu0
  %472 = vmatprep.mubr.bf16.mxu0 0
  %473 = vmatmul.mubr.bf16.gmra.mrb[0].mxu0 %v338
  %v474 = vpop.f32.mrb[0].mxu0
  %v475 = vadd.f32 %v343, %v474
  %v476 = vpop.f32.mrb[0].mxu0
  %v477 = vpop.f32.mrb[0].mxu0
  %v478 = vadd.f32 %v343, %v477
  %v479 = vpop.f32.mrb[0].mxu0
  %480 = vmatprep.mubr.bf16.mxu0 0
  %481 = vmatmul.mubr.bf16.gmra.mrb[0].mxu0 %v339
  %v482 = vpop.f32.mrb[0].mxu0
  %v483 = vadd.f32 %v343, %v482
  %v484 = vpop.f32.mrb[0].mxu0
  %v485 = vpop.f32.mrb[0].mxu0
  %v486 = vadd.f32 %v343, %v485
  %v487 = vpop.f32.mrb[0].mxu0
  %488 = vdwg.mxu0
  %v489 = vmax.f32 %v427, 0.0
  %v490 = vmax.f32 %v430, 0.0
  %v491 = vmax.f32 %v435, 0.0
  %v492 = vmax.f32 %v438, 0.0
  %v493 = vmax.f32 %v443, 0.0
  %v494 = vmax.f32 %v446, 0.0
  %v495 = vmax.f32 %v451, 0.0
  %v496 = vmax.f32 %v454, 0.0
  %v497 = vmax.f32 %v459, 0.0
  %v498 = vmax.f32 %v462, 0.0
  %v499 = vmax.f32 %v467, 0.0
  %v500 = vmax.f32 %v470, 0.0
  %v501 = vmax.f32 %v475, 0.0
  %v502 = vmax.f32 %v478, 0.0
  %v503 = vmax.f32 %v483, 0.0
  %v504 = vmax.f32 %v486, 0.0
  %v505 = vpack.c.bf16 %v490, %v489
  %v506 = vpack.c.bf16 %v492, %v491
  %v507 = vpack.c.bf16 %v494, %v493
  %v508 = vpack.c.bf16 %v496, %v495
  %v509 = vpack.c.bf16 %v498, %v497
  %v510 = vpack.c.bf16 %v500, %v499
  %v511 = vpack.c.bf16 %v502, %v501
  %v512 = vpack.c.bf16 %v504, %v503
  %v513 = vlaneseq
  %v514 = vshrl.u32 %v513, 7
  %v515 = vsub.s32 0, %v514
  %v516 = vrot.slane %v63, %v515
  %v533 = vunpack.c.l.b16 %v316
  %v534 = vunpack.c.l.b16 %v317
  %v535 = vunpack.c.l.b16 %v318
  %v536 = vunpack.c.l.b16 %v319
  %v537 = vunpack.c.l.b16 %v320
  %v538 = vunpack.c.l.b16 %v321
  %v539 = vunpack.c.l.b16 %v322
  %v540 = vunpack.c.l.b16 %v323
  %v541 = vunpack.c.l.b16 %v324
  %v542 = vunpack.c.l.b16 %v325
  %v543 = vunpack.c.l.b16 %v326
  %v544 = vunpack.c.l.b16 %v327
  %v545 = vunpack.c.l.b16 %v328
  %v546 = vunpack.c.l.b16 %v329
  %v547 = vunpack.c.l.b16 %v330
  %v548 = vunpack.c.l.b16 %v331
  %v549 = vpack.c.b16 %v534, %v533
  %v550 = vpack.c.b16 %v536, %v535
  %v551 = vpack.c.b16 %v538, %v537
  %v552 = vpack.c.b16 %v540, %v539
  %v553 = vpack.c.b16 %v542, %v541
  %v554 = vpack.c.b16 %v544, %v543
  %v555 = vpack.c.b16 %v546, %v545
  %v556 = vpack.c.b16 %v548, %v547
  %565 = vmatprep.subr.bf16.mxu0 0
  %566 = vmatpush1.bf16.msra.mxu0 %v549
  %567 = vmatprep.subr.bf16.mxu0 0
  %568 = vmatpush1.bf16.msra.mxu0 %v550
  %569 = vmatprep.subr.bf16.mxu0 0
  %570 = vmatpush1.bf16.msra.mxu0 %v551
  %571 = vmatprep.subr.bf16.mxu0 0
  %572 = vmatpush1.bf16.msra.mxu0 %v552
  %573 = vmatprep.subr.bf16.mxu0 0
  %574 = vmatpush1.bf16.msra.mxu0 %v553
  %575 = vmatprep.subr.bf16.mxu0 0
  %576 = vmatpush1.bf16.msra.mxu0 %v554
  %577 = vmatprep.subr.bf16.mxu0 0
  %578 = vmatpush1.bf16.msra.mxu0 %v555
  %579 = vmatprep.subr.bf16.mxu0 0
  %580 = vmatpush1.bf16.msra.mxu0 %v556
  %581 = vmatprep.subr.bf16.mxu0 0
  %582 = vmatpush1.bf16.msra.mxu0 0
  %583 = vmatprep.subr.bf16.mxu0 0
  %584 = vmatpush1.bf16.msra.mxu0 0
  %585 = vmatprep.subr.bf16.mxu0 0
  %586 = vmatpush1.bf16.msra.mxu0 0
  %587 = vmatprep.subr.bf16.mxu0 0
  %588 = vmatpush1.bf16.msra.mxu0 0
  %589 = vmatprep.subr.bf16.mxu0 0
  %590 = vmatpush1.bf16.msra.mxu0 0
  %591 = vmatprep.subr.bf16.mxu0 0
  %592 = vmatpush1.bf16.msra.mxu0 0
  %593 = vmatprep.subr.bf16.mxu0 0
  %594 = vmatpush1.bf16.msra.mxu0 0
  %595 = vmatprep.subr.bf16.mxu0 0
  %596 = vmatpush1.bf16.msra.mxu0 0
  %597 = vmatprep.mubr.bf16.mxu0 0
  %598 = vmatmul.mubr.bf16.gmra.mrb[0].mxu0 %v505
  %v599 = vpop.f32.mrb[0].mxu0
  %v600 = vadd.f32 %v516, %v599
  %v601 = vpop.f32.mrb[0].mxu0
  %v602 = vpop.f32.mrb[0].mxu0
  %v603 = vadd.f32 %v516, %v602
  %v604 = vpop.f32.mrb[0].mxu0
  %605 = vmatprep.mubr.bf16.mxu0 0
  %606 = vmatmul.mubr.bf16.gmra.mrb[0].mxu0 %v506
  %v607 = vpop.f32.mrb[0].mxu0
  %v608 = vadd.f32 %v516, %v607
  %v609 = vpop.f32.mrb[0].mxu0
  %v610 = vpop.f32.mrb[0].mxu0
  %v611 = vadd.f32 %v516, %v610
  %v612 = vpop.f32.mrb[0].mxu0
  %613 = vmatprep.mubr.bf16.mxu0 0
  %614 = vmatmul.mubr.bf16.gmra.mrb[0].mxu0 %v507
  %v615 = vpop.f32.mrb[0].mxu0
  %v616 = vadd.f32 %v516, %v615
  %v617 = vpop.f32.mrb[0].mxu0
  %v618 = vpop.f32.mrb[0].mxu0
  %v619 = vadd.f32 %v516, %v618
  %v620 = vpop.f32.mrb[0].mxu0
  %621 = vmatprep.mubr.bf16.mxu0 0
  %622 = vmatmul.mubr.bf16.gmra.mrb[0].mxu0 %v508
  %v623 = vpop.f32.mrb[0].mxu0
  %v624 = vadd.f32 %v516, %v623
  %v625 = vpop.f32.mrb[0].mxu0
  %v626 = vpop.f32.mrb[0].mxu0
  %v627 = vadd.f32 %v516, %v626
  %v628 = vpop.f32.mrb[0].mxu0
  %629 = vmatprep.mubr.bf16.mxu0 0
  %630 = vmatmul.mubr.bf16.gmra.mrb[0].mxu0 %v509
  %v631 = vpop.f32.mrb[0].mxu0
  %v632 = vadd.f32 %v516, %v631
  %v633 = vpop.f32.mrb[0].mxu0
  %v634 = vpop.f32.mrb[0].mxu0
  %v635 = vadd.f32 %v516, %v634
  %v636 = vpop.f32.mrb[0].mxu0
  %637 = vmatprep.mubr.bf16.mxu0 0
  %638 = vmatmul.mubr.bf16.gmra.mrb[0].mxu0 %v510
  %v639 = vpop.f32.mrb[0].mxu0
  %v640 = vadd.f32 %v516, %v639
  %v641 = vpop.f32.mrb[0].mxu0
  %v642 = vpop.f32.mrb[0].mxu0
  %v643 = vadd.f32 %v516, %v642
  %v644 = vpop.f32.mrb[0].mxu0
  %645 = vmatprep.mubr.bf16.mxu0 0
  %646 = vmatmul.mubr.bf16.gmra.mrb[0].mxu0 %v511
  %v647 = vpop.f32.mrb[0].mxu0
  %v648 = vadd.f32 %v516, %v647
  %v649 = vpop.f32.mrb[0].mxu0
  %v650 = vpop.f32.mrb[0].mxu0
  %v651 = vadd.f32 %v516, %v650
  %v652 = vpop.f32.mrb[0].mxu0
  %653 = vmatprep.mubr.bf16.mxu0 0
  %654 = vmatmul.mubr.bf16.gmra.mrb[0].mxu0 %v512
  %v655 = vpop.f32.mrb[0].mxu0
  %v656 = vadd.f32 %v516, %v655
  %v657 = vpop.f32.mrb[0].mxu0
  %v658 = vpop.f32.mrb[0].mxu0
  %v659 = vadd.f32 %v516, %v658
  %v660 = vpop.f32.mrb[0].mxu0
  %661 = vdwg.mxu0
  %vm662 = vcmask 64512
  %663 = vst.msk [vmem:[%s40] sm:$0xff] %vm662, %v600
  %664 = vst.msk [vmem:[%s40 + $0x8] sm:$0xff] %vm662, %v603
  %665 = vst.msk [vmem:[%s40 + $0x10] sm:$0xff] %vm662, %v608
  %666 = vst.msk [vmem:[%s40 + $0x18] sm:$0xff] %vm662, %v611
  %667 = vst.msk [vmem:[%s40 + $0x20] sm:$0xff] %vm662, %v616
  %668 = vst.msk [vmem:[%s40 + $0x28] sm:$0xff] %vm662, %v619
  %669 = vst.msk [vmem:[%s40 + $0x30] sm:$0xff] %vm662, %v624
  %670 = vst.msk [vmem:[%s40 + $0x38] sm:$0xff] %vm662, %v627
  %671 = vst.msk [vmem:[%s40 + $0x40] sm:$0xff] %vm662, %v632
  %672 = vst.msk [vmem:[%s40 + $0x48] sm:$0xff] %vm662, %v635
  %673 = vst.msk [vmem:[%s40 + $0x50] sm:$0xff] %vm662, %v640
  %674 = vst.msk [vmem:[%s40 + $0x58] sm:$0xff] %vm662, %v643
  %675 = vst.msk [vmem:[%s40 + $0x60] sm:$0xff] %vm662, %v648
  %676 = vst.msk [vmem:[%s40 + $0x68] sm:$0xff] %vm662, %v651
  %677 = vst.msk [vmem:[%s40 + $0x70] sm:$0xff] %vm662, %v656
  %678 = vst.msk [vmem:[%s40 + $0x78] sm:$0xff] %vm662, %v659
  %s679 = smul.u32 16, %s7
  %p680 = scmp.lt.s32.totalorder %s679, 15
  %s681 = scalar_select %p680, %s679, 15
  %s682 = smul.addr %s681, 8
  %s683 = scalar_lea.vmem %s3, %s682
  // Predicated region
  $region14: #{_pallas_forward.1} parent=0 // pred_check
    _
  $region15: #{_pallas_forward.1} parent=0 // pred_check_branch
    %685 = sbr.rel (0) target = $region17
  $region16: #{_pallas_forward.1} parent=0 // pred_region
    %s686 = smul.u32 16, %s7
  $region17: #{_pallas_forward.1} parent=0 // pred_fallthru
    _
  // Predicated region
  $region18: #{_pallas_forward.1} parent=0 // pred_check
    _
  $region19: #{_pallas_forward.1} parent=0 // pred_check_branch
    %688 = sbr.rel (0) target = $region21
  $region20: #{_pallas_forward.1} parent=0 // pred_region
    %s689 = smul.u32 16, %s7
    %p690 = scmp.lt.s32.totalorder %s689, 15
    %s691 = scalar_select %p690, %s689, 15
    %s692 = smul.addr %s691, 8
    %s693 = scalar_lea.vmem %s3, %s692
  $region21: #{_pallas_forward.1} parent=0 // pred_fallthru
    _

// kernel: _pallas_forward.1
$region0: #{_pallas_forward.1}
  #allocation0 [shape = 'u32[]', space=smem, size = 0x4, offset = 0x4, fixed_abs, tag = 'smem constant byte address 0x4 - core index']
  #allocation1 [shape = 'u32[144,128]{1,0:T(1,128)}', space=vmem, size = 0x12000, scoped, tag = 'internal scratch']
  %s0 = inlined_call_operand.vmem [shape: f32[128,2], index: 0, kind: input, shape index: {}]
  %s1 = inlined_call_operand.vmem [shape: bf16[256,128], index: 1, kind: input, shape index: {}]
  %s2 = inlined_call_operand.vmem [shape: f32[8,128], index: 2, kind: input, shape index: {}]
  %s3 = inlined_call_operand.vmem [shape: f32[128,8], index: 3, kind: output, shape index: {}]
  %s4 = sld [smem:[#allocation0]]
  $region22: #{_pallas_forward.1} parent=0
    _
  %s6 = ssub.s32 1, %s4
  %s7 = scalar_select 0, %s6, %s4
  // Predicated region
  $region2: #{_pallas_forward.1} parent=0 // pred_check
    _
  $region3: #{_pallas_forward.1} parent=0 // pred_check_branch
    %9 = sbr.rel (0) target = $region5
  $region4: #{_pallas_forward.1} parent=0 // pred_region
    _
  $region5: #{_pallas_forward.1} parent=0 // pred_fallthru
    _
  // Predicated region
  $region6: #{_pallas_forward.1} parent=0 // pred_check
    _
  $region7: #{_pallas_forward.1} parent=0 // pred_check_branch
    %11 = sbr.rel (0) target = $region9
  $region8: #{_pallas_forward.1} parent=0 // pred_region
    _
  $region9: #{_pallas_forward.1} parent=0 // pred_fallthru
    _
  // Predicated region
  $region10: #{_pallas_forward.1} parent=0 // pred_check
    _
  $region11: #{_pallas_forward.1} parent=0 // pred_check_branch
    %13 = sbr.rel (0) target = $region13
  $region12: #{_pallas_forward.1} parent=0 // pred_region
    _
  $region13: #{_pallas_forward.1} parent=0 // pred_fallthru
    _
  %v15 = vld [vmem:[%s0] sm:$0xff]
  %v16 = vld [vmem:[%s0 + $0x8] sm:$0xff]
  %v17 = vld [vmem:[%s0 + $0x10] sm:$0xff]
  %v18 = vld [vmem:[%s0 + $0x18] sm:$0xff]
  %v19 = vld [vmem:[%s0 + $0x20] sm:$0xff]
  %v20 = vld [vmem:[%s0 + $0x28] sm:$0xff]
  %v21 = vld [vmem:[%s0 + $0x30] sm:$0xff]
  %v22 = vld [vmem:[%s0 + $0x38] sm:$0xff]
  %v23 = vld [vmem:[%s0 + $0x40] sm:$0xff]
  %v24 = vld [vmem:[%s0 + $0x48] sm:$0xff]
  %v25 = vld [vmem:[%s0 + $0x50] sm:$0xff]
  %v26 = vld [vmem:[%s0 + $0x58] sm:$0xff]
  %v27 = vld [vmem:[%s0 + $0x60] sm:$0xff]
  %v28 = vld [vmem:[%s0 + $0x68] sm:$0xff]
  %v29 = vld [vmem:[%s0 + $0x70] sm:$0xff]
  %v30 = vld [vmem:[%s0 + $0x78] sm:$0xff]
  %v31 = vld [vmem:[%s2] sm:$0x1]
  %v32 = vld [vmem:[%s2 + $0x1] sm:$0x1]
  %v33 = vld [vmem:[%s2 + $0x2] sm:$0x1]
  %v34 = vld [vmem:[%s2 + $0x3] sm:$0x1]
  %v35 = vld [vmem:[%s2 + $0x4] sm:$0x1]
  %37 = vset.pattern.permute.xlu0 0
  %38 = vperm.xlu0 %37, %v15
  %v39 = vpop.permute.xlu0 %38
  %42 = vset.pattern.permute.xlu0 0
  %43 = vperm.xlu0 %42, %v16
  %v44 = vpop.permute.xlu0 %43
  %47 = vset.pattern.permute.xlu0 0
  %48 = vperm.xlu0 %47, %v17
  %v49 = vpop.permute.xlu0 %48
  %52 = vset.pattern.permute.xlu0 0
  %53 = vperm.xlu0 %52, %v18
  %v54 = vpop.permute.xlu0 %53
  %57 = vset.pattern.permute.xlu0 0
  %58 = vperm.xlu0 %57, %v19
  %v59 = vpop.permute.xlu0 %58
  %62 = vset.pattern.permute.xlu0 0
  %63 = vperm.xlu0 %62, %v20
  %v64 = vpop.permute.xlu0 %63
  %67 = vset.pattern.permute.xlu0 0
  %68 = vperm.xlu0 %67, %v21
  %v69 = vpop.permute.xlu0 %68
  %72 = vset.pattern.permute.xlu0 0
  %73 = vperm.xlu0 %72, %v22
  %v74 = vpop.permute.xlu0 %73
  %77 = vset.pattern.permute.xlu0 0
  %78 = vperm.xlu0 %77, %v23
  %v79 = vpop.permute.xlu0 %78
  %82 = vset.pattern.permute.xlu0 0
  %83 = vperm.xlu0 %82, %v24
  %v84 = vpop.permute.xlu0 %83
  %87 = vset.pattern.permute.xlu0 0
  %88 = vperm.xlu0 %87, %v25
  %v89 = vpop.permute.xlu0 %88
  %92 = vset.pattern.permute.xlu0 0
  %93 = vperm.xlu0 %92, %v26
  %v94 = vpop.permute.xlu0 %93
  %97 = vset.pattern.permute.xlu0 0
  %98 = vperm.xlu0 %97, %v27
  %v99 = vpop.permute.xlu0 %98
  %102 = vset.pattern.permute.xlu0 0
  %103 = vperm.xlu0 %102, %v28
  %v104 = vpop.permute.xlu0 %103
  %107 = vset.pattern.permute.xlu0 0
  %108 = vperm.xlu0 %107, %v29
  %v109 = vpop.permute.xlu0 %108
  %112 = vset.pattern.permute.xlu0 0
  %113 = vperm.xlu0 %112, %v30
  %v114 = vpop.permute.xlu0 %113
  %v116 = vlaneseq
  %v117 = vshrl.u32 %v116, 7
  %v118 = vsub.s32 0, %v117
  %v119 = vrot.slane %v31, %v118
  %v120 = vmul.f32 %v39, %v119
  %v121 = vmul.f32 %v44, %v119
  %v122 = vmul.f32 %v49, %v119
  %v123 = vmul.f32 %v54, %v119
  %v124 = vmul.f32 %v59, %v119
  %v125 = vmul.f32 %v64, %v119
  %v126 = vmul.f32 %v69, %v119
  %v127 = vmul.f32 %v74, %v119
  %v128 = vmul.f32 %v79, %v119
  %v129 = vmul.f32 %v84, %v119
  %v130 = vmul.f32 %v89, %v119
  %v131 = vmul.f32 %v94, %v119
  %v132 = vmul.f32 %v99, %v119
  %v133 = vmul.f32 %v104, %v119
  %v134 = vmul.f32 %v109, %v119
  %v135 = vmul.f32 %v114, %v119
  %136 = vset.pattern.permute.xlu0 1
  %137 = vperm.xlu0 %136, %v15
  %v138 = vpop.permute.xlu0 %137
  %140 = vset.pattern.permute.xlu0 1
  %141 = vperm.xlu0 %140, %v16
  %v142 = vpop.permute.xlu0 %141
  %144 = vset.pattern.permute.xlu0 1
  %145 = vperm.xlu0 %144, %v17
  %v146 = vpop.permute.xlu0 %145
  %148 = vset.pattern.permute.xlu0 1
  %149 = vperm.xlu0 %148, %v18
  %v150 = vpop.permute.xlu0 %149
  %152 = vset.pattern.permute.xlu0 1
  %153 = vperm.xlu0 %152, %v19
  %v154 = vpop.permute.xlu0 %153
  %156 = vset.pattern.permute.xlu0 1
  %157 = vperm.xlu0 %156, %v20
  %v158 = vpop.permute.xlu0 %157
  %160 = vset.pattern.permute.xlu0 1
  %161 = vperm.xlu0 %160, %v21
  %v162 = vpop.permute.xlu0 %161
  %164 = vset.pattern.permute.xlu0 1
  %165 = vperm.xlu0 %164, %v22
  %v166 = vpop.permute.xlu0 %165
  %168 = vset.pattern.permute.xlu0 1
  %169 = vperm.xlu0 %168, %v23
  %v170 = vpop.permute.xlu0 %169
  %172 = vset.pattern.permute.xlu0 1
  %173 = vperm.xlu0 %172, %v24
  %v174 = vpop.permute.xlu0 %173
  %176 = vset.pattern.permute.xlu0 1
  %177 = vperm.xlu0 %176, %v25
  %v178 = vpop.permute.xlu0 %177
  %180 = vset.pattern.permute.xlu0 1
  %181 = vperm.xlu0 %180, %v26
  %v182 = vpop.permute.xlu0 %181
  %184 = vset.pattern.permute.xlu0 1
  %185 = vperm.xlu0 %184, %v27
  %v186 = vpop.permute.xlu0 %185
  %188 = vset.pattern.permute.xlu0 1
  %189 = vperm.xlu0 %188, %v28
  %v190 = vpop.permute.xlu0 %189
  %192 = vset.pattern.permute.xlu0 1
  %193 = vperm.xlu0 %192, %v29
  %v194 = vpop.permute.xlu0 %193
  %196 = vset.pattern.permute.xlu0 1
  %197 = vperm.xlu0 %196, %v30
  %v198 = vpop.permute.xlu0 %197
  %v200 = vlaneseq
  %v201 = vshrl.u32 %v200, 7
  %v202 = vsub.s32 0, %v201
  %v203 = vrot.slane %v32, %v202
  %v204 = vmul.f32 %v138, %v203
  %v205 = vmul.f32 %v142, %v203
  %v206 = vmul.f32 %v146, %v203
  %v207 = vmul.f32 %v150, %v203
  %v208 = vmul.f32 %v154, %v203
  %v209 = vmul.f32 %v158, %v203
  %v210 = vmul.f32 %v162, %v203
  %v211 = vmul.f32 %v166, %v203
  %v212 = vmul.f32 %v170, %v203
  %v213 = vmul.f32 %v174, %v203
  %v214 = vmul.f32 %v178, %v203
  %v215 = vmul.f32 %v182, %v203
  %v216 = vmul.f32 %v186, %v203
  %v217 = vmul.f32 %v190, %v203
  %v218 = vmul.f32 %v194, %v203
  %v219 = vmul.f32 %v198, %v203
  %v220 = vadd.f32 %v120, %v204
  %v221 = vadd.f32 %v121, %v205
  %v222 = vadd.f32 %v122, %v206
  %v223 = vadd.f32 %v123, %v207
  %v224 = vadd.f32 %v124, %v208
  %v225 = vadd.f32 %v125, %v209
  %v226 = vadd.f32 %v126, %v210
  %v227 = vadd.f32 %v127, %v211
  %v228 = vadd.f32 %v128, %v212
  %v229 = vadd.f32 %v129, %v213
  %v230 = vadd.f32 %v130, %v214
  %v231 = vadd.f32 %v131, %v215
  %v232 = vadd.f32 %v132, %v216
  %v233 = vadd.f32 %v133, %v217
  %v234 = vadd.f32 %v134, %v218
  %v235 = vadd.f32 %v135, %v219
  %v236 = vlaneseq
  %v237 = vshrl.u32 %v236, 7
  %v238 = vsub.s32 0, %v237
  %v239 = vrot.slane %v33, %v238
  %v240 = vadd.f32 %v220, %v239
  %v241 = vadd.f32 %v221, %v239
  %v242 = vadd.f32 %v222, %v239
  %v243 = vadd.f32 %v223, %v239
  %v244 = vadd.f32 %v224, %v239
  %v245 = vadd.f32 %v225, %v239
  %v246 = vadd.f32 %v226, %v239
  %v247 = vadd.f32 %v227, %v239
  %v248 = vadd.f32 %v228, %v239
  %v249 = vadd.f32 %v229, %v239
  %v250 = vadd.f32 %v230, %v239
  %v251 = vadd.f32 %v231, %v239
  %v252 = vadd.f32 %v232, %v239
  %v253 = vadd.f32 %v233, %v239
  %v254 = vadd.f32 %v234, %v239
  %v255 = vadd.f32 %v235, %v239
  %v256 = vmax.f32 %v240, 0.0
  %v257 = vmax.f32 %v241, 0.0
  %v258 = vmax.f32 %v242, 0.0
  %v259 = vmax.f32 %v243, 0.0
  %v260 = vmax.f32 %v244, 0.0
  %v261 = vmax.f32 %v245, 0.0
  %v262 = vmax.f32 %v246, 0.0
  %v263 = vmax.f32 %v247, 0.0
  %v264 = vmax.f32 %v248, 0.0
  %v265 = vmax.f32 %v249, 0.0
  %v266 = vmax.f32 %v250, 0.0
  %v267 = vmax.f32 %v251, 0.0
  %v268 = vmax.f32 %v252, 0.0
  %v269 = vmax.f32 %v253, 0.0
  %v270 = vmax.f32 %v254, 0.0
  %v271 = vmax.f32 %v255, 0.0
  %v272 = vld [vmem:[%s1] sm:$0xf]
  %v273 = vld [vmem:[%s1 + $0x4] sm:$0xf]
  %v274 = vld [vmem:[%s1 + $0x8] sm:$0xf]
  %v275 = vld [vmem:[%s1 + $0xc] sm:$0xf]
  %v276 = vld [vmem:[%s1 + $0x10] sm:$0xf]
  %v277 = vld [vmem:[%s1 + $0x14] sm:$0xf]
  %v278 = vld [vmem:[%s1 + $0x18] sm:$0xf]
  %v279 = vld [vmem:[%s1 + $0x1c] sm:$0xf]
  %v280 = vld [vmem:[%s1 + $0x20] sm:$0xf]
  %v281 = vld [vmem:[%s1 + $0x24] sm:$0xf]
  %v282 = vld [vmem:[%s1 + $0x28] sm:$0xf]
  %v283 = vld [vmem:[%s1 + $0x2c] sm:$0xf]
  %v284 = vld [vmem:[%s1 + $0x30] sm:$0xf]
  %v285 = vld [vmem:[%s1 + $0x34] sm:$0xf]
  %v286 = vld [vmem:[%s1 + $0x38] sm:$0xf]
  %v287 = vld [vmem:[%s1 + $0x3c] sm:$0xf]
  %v288 = vld [vmem:[%s1 + $0x40] sm:$0xf]
  %v289 = vld [vmem:[%s1 + $0x44] sm:$0xf]
  %v290 = vld [vmem:[%s1 + $0x48] sm:$0xf]
  %v291 = vld [vmem:[%s1 + $0x4c] sm:$0xf]
  %v292 = vld [vmem:[%s1 + $0x50] sm:$0xf]
  %v293 = vld [vmem:[%s1 + $0x54] sm:$0xf]
  %v294 = vld [vmem:[%s1 + $0x58] sm:$0xf]
  %v295 = vld [vmem:[%s1 + $0x5c] sm:$0xf]
  %v296 = vld [vmem:[%s1 + $0x60] sm:$0xf]
  %v297 = vld [vmem:[%s1 + $0x64] sm:$0xf]
  %v298 = vld [vmem:[%s1 + $0x68] sm:$0xf]
  %v299 = vld [vmem:[%s1 + $0x6c] sm:$0xf]
  %v300 = vld [vmem:[%s1 + $0x70] sm:$0xf]
  %v301 = vld [vmem:[%s1 + $0x74] sm:$0xf]
  %v302 = vld [vmem:[%s1 + $0x78] sm:$0xf]
  %v303 = vld [vmem:[%s1 + $0x7c] sm:$0xf]
  %v304 = vpack.c.bf16 %v257, %v256
  %v305 = vpack.c.bf16 %v259, %v258
  %v306 = vpack.c.bf16 %v261, %v260
  %v307 = vpack.c.bf16 %v263, %v262
  %v308 = vpack.c.bf16 %v265, %v264
  %v309 = vpack.c.bf16 %v267, %v266
  %v310 = vpack.c.bf16 %v269, %v268
  %v311 = vpack.c.bf16 %v271, %v270
  %v312 = vlaneseq
  %v313 = vshrl.u32 %v312, 7
  %v314 = vsub.s32 0, %v313
  %v315 = vrot.slane %v34, %v314
  %v332 = vunpack.c.l.b16 %v272
  %v333 = vunpack.c.l.b16 %v273
  %v334 = vunpack.c.l.b16 %v274
  %v335 = vunpack.c.l.b16 %v275
  %v336 = vunpack.c.l.b16 %v276
  %v337 = vunpack.c.l.b16 %v277
  %v338 = vunpack.c.l.b16 %v278
  %v339 = vunpack.c.l.b16 %v279
  %v340 = vunpack.c.l.b16 %v280
  %v341 = vunpack.c.l.b16 %v281
  %v342 = vunpack.c.l.b16 %v282
  %v343 = vunpack.c.l.b16 %v283
  %v344 = vunpack.c.l.b16 %v284
  %v345 = vunpack.c.l.b16 %v285
  %v346 = vunpack.c.l.b16 %v286
  %v347 = vunpack.c.l.b16 %v287
  %v348 = vpack.c.b16 %v333, %v332
  %v349 = vpack.c.b16 %v335, %v334
  %v350 = vpack.c.b16 %v337, %v336
  %v351 = vpack.c.b16 %v339, %v338
  %v352 = vpack.c.b16 %v341, %v340
  %v353 = vpack.c.b16 %v343, %v342
  %v354 = vpack.c.b16 %v345, %v344
  %v355 = vpack.c.b16 %v347, %v346
  %364 = vmatprep.subr.bf16.mxu0 0
  %365 = vmatpush1.bf16.msra.mxu0 %v348
  %366 = vmatprep.subr.bf16.mxu0 0
  %367 = vmatpush1.bf16.msra.mxu0 %v349
  %368 = vmatprep.subr.bf16.mxu0 0
  %369 = vmatpush1.bf16.msra.mxu0 %v350
  %370 = vmatprep.subr.bf16.mxu0 0
  %371 = vmatpush1.bf16.msra.mxu0 %v351
  %372 = vmatprep.subr.bf16.mxu0 0
  %373 = vmatpush1.bf16.msra.mxu0 %v352
  %374 = vmatprep.subr.bf16.mxu0 0
  %375 = vmatpush1.bf16.msra.mxu0 %v353
  %376 = vmatprep.subr.bf16.mxu0 0
  %377 = vmatpush1.bf16.msra.mxu0 %v354
  %378 = vmatprep.subr.bf16.mxu0 0
  %379 = vmatpush1.bf16.msra.mxu0 %v355
  %380 = vmatprep.subr.bf16.mxu0 0
  %381 = vmatpush1.bf16.msra.mxu0 0
  %382 = vmatprep.subr.bf16.mxu0 0
  %383 = vmatpush1.bf16.msra.mxu0 0
  %384 = vmatprep.subr.bf16.mxu0 0
  %385 = vmatpush1.bf16.msra.mxu0 0
  %386 = vmatprep.subr.bf16.mxu0 0
  %387 = vmatpush1.bf16.msra.mxu0 0
  %388 = vmatprep.subr.bf16.mxu0 0
  %389 = vmatpush1.bf16.msra.mxu0 0
  %390 = vmatprep.subr.bf16.mxu0 0
  %391 = vmatpush1.bf16.msra.mxu0 0
  %392 = vmatprep.subr.bf16.mxu0 0
  %393 = vmatpush1.bf16.msra.mxu0 0
  %394 = vmatprep.subr.bf16.mxu0 0
  %395 = vmatpush1.bf16.msra.mxu0 0
  %396 = vmatprep.mubr.bf16.mxu0 0
  %397 = vmatmul.mubr.bf16.gmra.mrb[0].mxu0 %v304
  %v398 = vpop.f32.mrb[0].mxu0
  %v399 = vadd.f32 %v315, %v398
  %v400 = vpop.f32.mrb[0].mxu0
  %v401 = vpop.f32.mrb[0].mxu0
  %v402 = vadd.f32 %v315, %v401
  %v403 = vpop.f32.mrb[0].mxu0
  %404 = vmatprep.mubr.bf16.mxu0 0
  %405 = vmatmul.mubr.bf16.gmra.mrb[0].mxu0 %v305
  %v406 = vpop.f32.mrb[0].mxu0
  %v407 = vadd.f32 %v315, %v406
  %v408 = vpop.f32.mrb[0].mxu0
  %v409 = vpop.f32.mrb[0].mxu0
  %v410 = vadd.f32 %v315, %v409
  %v411 = vpop.f32.mrb[0].mxu0
  %412 = vmatprep.mubr.bf16.mxu0 0
  %413 = vmatmul.mubr.bf16.gmra.mrb[0].mxu0 %v306
  %v414 = vpop.f32.mrb[0].mxu0
  %v415 = vadd.f32 %v315, %v414
  %v416 = vpop.f32.mrb[0].mxu0
  %v417 = vpop.f32.mrb[0].mxu0
  %v418 = vadd.f32 %v315, %v417
  %v419 = vpop.f32.mrb[0].mxu0
  %420 = vmatprep.mubr.bf16.mxu0 0
  %421 = vmatmul.mubr.bf16.gmra.mrb[0].mxu0 %v307
  %v422 = vpop.f32.mrb[0].mxu0
  %v423 = vadd.f32 %v315, %v422
  %v424 = vpop.f32.mrb[0].mxu0
  %v425 = vpop.f32.mrb[0].mxu0
  %v426 = vadd.f32 %v315, %v425
  %v427 = vpop.f32.mrb[0].mxu0
  %428 = vmatprep.mubr.bf16.mxu0 0
  %429 = vmatmul.mubr.bf16.gmra.mrb[0].mxu0 %v308
  %v430 = vpop.f32.mrb[0].mxu0
  %v431 = vadd.f32 %v315, %v430
  %v432 = vpop.f32.mrb[0].mxu0
  %v433 = vpop.f32.mrb[0].mxu0
  %v434 = vadd.f32 %v315, %v433
  %v435 = vpop.f32.mrb[0].mxu0
  %436 = vmatprep.mubr.bf16.mxu0 0
  %437 = vmatmul.mubr.bf16.gmra.mrb[0].mxu0 %v309
  %v438 = vpop.f32.mrb[0].mxu0
  %v439 = vadd.f32 %v315, %v438
  %v440 = vpop.f32.mrb[0].mxu0
  %v441 = vpop.f32.mrb[0].mxu0
  %v442 = vadd.f32 %v315, %v441
  %v443 = vpop.f32.mrb[0].mxu0
  %444 = vmatprep.mubr.bf16.mxu0 0
  %445 = vmatmul.mubr.bf16.gmra.mrb[0].mxu0 %v310
  %v446 = vpop.f32.mrb[0].mxu0
  %v447 = vadd.f32 %v315, %v446
  %v448 = vpop.f32.mrb[0].mxu0
  %v449 = vpop.f32.mrb[0].mxu0
  %v450 = vadd.f32 %v315, %v449
  %v451 = vpop.f32.mrb[0].mxu0
  %452 = vmatprep.mubr.bf16.mxu0 0
  %453 = vmatmul.mubr.bf16.gmra.mrb[0].mxu0 %v311
  %v454 = vpop.f32.mrb[0].mxu0
  %v455 = vadd.f32 %v315, %v454
  %v456 = vpop.f32.mrb[0].mxu0
  %v457 = vpop.f32.mrb[0].mxu0
  %v458 = vadd.f32 %v315, %v457
  %v459 = vpop.f32.mrb[0].mxu0
  %460 = vdwg.mxu0
  %v461 = vmax.f32 %v399, 0.0
  %v462 = vmax.f32 %v402, 0.0
  %v463 = vmax.f32 %v407, 0.0
  %v464 = vmax.f32 %v410, 0.0
  %v465 = vmax.f32 %v415, 0.0
  %v466 = vmax.f32 %v418, 0.0
  %v467 = vmax.f32 %v423, 0.0
  %v468 = vmax.f32 %v426, 0.0
  %v469 = vmax.f32 %v431, 0.0
  %v470 = vmax.f32 %v434, 0.0
  %v471 = vmax.f32 %v439, 0.0
  %v472 = vmax.f32 %v442, 0.0
  %v473 = vmax.f32 %v447, 0.0
  %v474 = vmax.f32 %v450, 0.0
  %v475 = vmax.f32 %v455, 0.0
  %v476 = vmax.f32 %v458, 0.0
  %v477 = vpack.c.bf16 %v462, %v461
  %v478 = vpack.c.bf16 %v464, %v463
  %v479 = vpack.c.bf16 %v466, %v465
  %v480 = vpack.c.bf16 %v468, %v467
  %v481 = vpack.c.bf16 %v470, %v469
  %v482 = vpack.c.bf16 %v472, %v471
  %v483 = vpack.c.bf16 %v474, %v473
  %v484 = vpack.c.bf16 %v476, %v475
  %v485 = vlaneseq
  %v486 = vshrl.u32 %v485, 7
  %v487 = vsub.s32 0, %v486
  %v488 = vrot.slane %v35, %v487
  %v505 = vunpack.c.l.b16 %v288
  %v506 = vunpack.c.l.b16 %v289
  %v507 = vunpack.c.l.b16 %v290
  %v508 = vunpack.c.l.b16 %v291
  %v509 = vunpack.c.l.b16 %v292
  %v510 = vunpack.c.l.b16 %v293
  %v511 = vunpack.c.l.b16 %v294
  %v512 = vunpack.c.l.b16 %v295
  %v513 = vunpack.c.l.b16 %v296
  %v514 = vunpack.c.l.b16 %v297
  %v515 = vunpack.c.l.b16 %v298
  %v516 = vunpack.c.l.b16 %v299
  %v517 = vunpack.c.l.b16 %v300
  %v518 = vunpack.c.l.b16 %v301
  %v519 = vunpack.c.l.b16 %v302
  %v520 = vunpack.c.l.b16 %v303
  %v521 = vpack.c.b16 %v506, %v505
  %v522 = vpack.c.b16 %v508, %v507
  %v523 = vpack.c.b16 %v510, %v509
  %v524 = vpack.c.b16 %v512, %v511
  %v525 = vpack.c.b16 %v514, %v513
  %v526 = vpack.c.b16 %v516, %v515
  %v527 = vpack.c.b16 %v518, %v517
  %v528 = vpack.c.b16 %v520, %v519
  %537 = vmatprep.subr.bf16.mxu0 0
  %538 = vmatpush1.bf16.msra.mxu0 %v521
  %539 = vmatprep.subr.bf16.mxu0 0
  %540 = vmatpush1.bf16.msra.mxu0 %v522
  %541 = vmatprep.subr.bf16.mxu0 0
  %542 = vmatpush1.bf16.msra.mxu0 %v523
  %543 = vmatprep.subr.bf16.mxu0 0
  %544 = vmatpush1.bf16.msra.mxu0 %v524
  %545 = vmatprep.subr.bf16.mxu0 0
  %546 = vmatpush1.bf16.msra.mxu0 %v525
  %547 = vmatprep.subr.bf16.mxu0 0
  %548 = vmatpush1.bf16.msra.mxu0 %v526
  %549 = vmatprep.subr.bf16.mxu0 0
  %550 = vmatpush1.bf16.msra.mxu0 %v527
  %551 = vmatprep.subr.bf16.mxu0 0
  %552 = vmatpush1.bf16.msra.mxu0 %v528
  %553 = vmatprep.subr.bf16.mxu0 0
  %554 = vmatpush1.bf16.msra.mxu0 0
  %555 = vmatprep.subr.bf16.mxu0 0
  %556 = vmatpush1.bf16.msra.mxu0 0
  %557 = vmatprep.subr.bf16.mxu0 0
  %558 = vmatpush1.bf16.msra.mxu0 0
  %559 = vmatprep.subr.bf16.mxu0 0
  %560 = vmatpush1.bf16.msra.mxu0 0
  %561 = vmatprep.subr.bf16.mxu0 0
  %562 = vmatpush1.bf16.msra.mxu0 0
  %563 = vmatprep.subr.bf16.mxu0 0
  %564 = vmatpush1.bf16.msra.mxu0 0
  %565 = vmatprep.subr.bf16.mxu0 0
  %566 = vmatpush1.bf16.msra.mxu0 0
  %567 = vmatprep.subr.bf16.mxu0 0
  %568 = vmatpush1.bf16.msra.mxu0 0
  %569 = vmatprep.mubr.bf16.mxu0 0
  %570 = vmatmul.mubr.bf16.gmra.mrb[0].mxu0 %v477
  %v571 = vpop.f32.mrb[0].mxu0
  %v572 = vadd.f32 %v488, %v571
  %v573 = vpop.f32.mrb[0].mxu0
  %v574 = vpop.f32.mrb[0].mxu0
  %v575 = vadd.f32 %v488, %v574
  %v576 = vpop.f32.mrb[0].mxu0
  %577 = vmatprep.mubr.bf16.mxu0 0
  %578 = vmatmul.mubr.bf16.gmra.mrb[0].mxu0 %v478
  %v579 = vpop.f32.mrb[0].mxu0
  %v580 = vadd.f32 %v488, %v579
  %v581 = vpop.f32.mrb[0].mxu0
  %v582 = vpop.f32.mrb[0].mxu0
  %v583 = vadd.f32 %v488, %v582
  %v584 = vpop.f32.mrb[0].mxu0
  %585 = vmatprep.mubr.bf16.mxu0 0
  %586 = vmatmul.mubr.bf16.gmra.mrb[0].mxu0 %v479
  %v587 = vpop.f32.mrb[0].mxu0
  %v588 = vadd.f32 %v488, %v587
  %v589 = vpop.f32.mrb[0].mxu0
  %v590 = vpop.f32.mrb[0].mxu0
  %v591 = vadd.f32 %v488, %v590
  %v592 = vpop.f32.mrb[0].mxu0
  %593 = vmatprep.mubr.bf16.mxu0 0
  %594 = vmatmul.mubr.bf16.gmra.mrb[0].mxu0 %v480
  %v595 = vpop.f32.mrb[0].mxu0
  %v596 = vadd.f32 %v488, %v595
  %v597 = vpop.f32.mrb[0].mxu0
  %v598 = vpop.f32.mrb[0].mxu0
  %v599 = vadd.f32 %v488, %v598
  %v600 = vpop.f32.mrb[0].mxu0
  %601 = vmatprep.mubr.bf16.mxu0 0
  %602 = vmatmul.mubr.bf16.gmra.mrb[0].mxu0 %v481
  %v603 = vpop.f32.mrb[0].mxu0
  %v604 = vadd.f32 %v488, %v603
  %v605 = vpop.f32.mrb[0].mxu0
  %v606 = vpop.f32.mrb[0].mxu0
  %v607 = vadd.f32 %v488, %v606
  %v608 = vpop.f32.mrb[0].mxu0
  %609 = vmatprep.mubr.bf16.mxu0 0
  %610 = vmatmul.mubr.bf16.gmra.mrb[0].mxu0 %v482
  %v611 = vpop.f32.mrb[0].mxu0
  %v612 = vadd.f32 %v488, %v611
  %v613 = vpop.f32.mrb[0].mxu0
  %v614 = vpop.f32.mrb[0].mxu0
  %v615 = vadd.f32 %v488, %v614
  %v616 = vpop.f32.mrb[0].mxu0
  %617 = vmatprep.mubr.bf16.mxu0 0
  %618 = vmatmul.mubr.bf16.gmra.mrb[0].mxu0 %v483
  %v619 = vpop.f32.mrb[0].mxu0
  %v620 = vadd.f32 %v488, %v619
  %v621 = vpop.f32.mrb[0].mxu0
  %v622 = vpop.f32.mrb[0].mxu0
  %v623 = vadd.f32 %v488, %v622
  %v624 = vpop.f32.mrb[0].mxu0
  %625 = vmatprep.mubr.bf16.mxu0 0
  %626 = vmatmul.mubr.bf16.gmra.mrb[0].mxu0 %v484
  %v627 = vpop.f32.mrb[0].mxu0
  %v628 = vadd.f32 %v488, %v627
  %v629 = vpop.f32.mrb[0].mxu0
  %v630 = vpop.f32.mrb[0].mxu0
  %v631 = vadd.f32 %v488, %v630
  %v632 = vpop.f32.mrb[0].mxu0
  %633 = vdwg.mxu0
  %vm634 = vcmask 64512
  %635 = vst.msk [vmem:[%s3] sm:$0xff] %vm634, %v572
  %636 = vst.msk [vmem:[%s3 + $0x8] sm:$0xff] %vm634, %v575
  %637 = vst.msk [vmem:[%s3 + $0x10] sm:$0xff] %vm634, %v580
  %638 = vst.msk [vmem:[%s3 + $0x18] sm:$0xff] %vm634, %v583
  %639 = vst.msk [vmem:[%s3 + $0x20] sm:$0xff] %vm634, %v588
  %640 = vst.msk [vmem:[%s3 + $0x28] sm:$0xff] %vm634, %v591
  %641 = vst.msk [vmem:[%s3 + $0x30] sm:$0xff] %vm634, %v596
  %642 = vst.msk [vmem:[%s3 + $0x38] sm:$0xff] %vm634, %v599
  %643 = vst.msk [vmem:[%s3 + $0x40] sm:$0xff] %vm634, %v604
  %644 = vst.msk [vmem:[%s3 + $0x48] sm:$0xff] %vm634, %v607
  %645 = vst.msk [vmem:[%s3 + $0x50] sm:$0xff] %vm634, %v612
  %646 = vst.msk [vmem:[%s3 + $0x58] sm:$0xff] %vm634, %v615
  %647 = vst.msk [vmem:[%s3 + $0x60] sm:$0xff] %vm634, %v620
  %648 = vst.msk [vmem:[%s3 + $0x68] sm:$0xff] %vm634, %v623
  %649 = vst.msk [vmem:[%s3 + $0x70] sm:$0xff] %vm634, %v628
  %650 = vst.msk [vmem:[%s3 + $0x78] sm:$0xff] %vm634, %v631
  // Predicated region
  $region14: #{_pallas_forward.1} parent=0 // pred_check
    _
  $region15: #{_pallas_forward.1} parent=0 // pred_check_branch
    %652 = sbr.rel (0) target = $region17
  $region16: #{_pallas_forward.1} parent=0 // pred_region
    _
  $region17: #{_pallas_forward.1} parent=0 // pred_fallthru
    _
  // Predicated region
  $region18: #{_pallas_forward.1} parent=0 // pred_check
    _
  $region19: #{_pallas_forward.1} parent=0 // pred_check_branch
    %654 = sbr.rel (0) target = $region21
  $region20: #{_pallas_forward.1} parent=0 // pred_region
    _
  $region21: #{_pallas_forward.1} parent=0 // pred_fallthru
    _

</llo_original>
